<compile_context>
chip_gen: v7x
topology: tpu7x:2x2x1
jax: 0.10.0
libtpu: 0.0.40
codegen_flags: <defaults>
</compile_context>

<pallas_src>
import functools

import jax
import jax.numpy as jnp
from jax.experimental import pallas as pl
from jax.experimental.pallas import tpu as pltpu


_VMEM_TILE_BUDGET = 16 * 1024 * 1024   # double-buffered inputs + accumulators
_NUM_CORES = 2                         # v7x has 2 TCs; harmless on v5e/v6e


def masked_nll_kernel(pred_ref, tgt_ref, msk_ref, num_ref, den_ref,
                      acc_num, acc_den, *, n_rows):
    p = pl.program_id(0)                    # core-split axis ("parallel")
    i = pl.program_id(1)                    # row-tile axis ("arbitrary")
    tn = tgt_ref.shape[1]

    @pl.when(i == 0)
    def _init():
        acc_num[...] = jnp.zeros_like(acc_num)
        acc_den[...] = jnp.zeros_like(acc_den)

    pred = pred_ref[...].astype(jnp.float32)        # (C_pad, TN) log-probs
    tgt = tgt_ref[...]                              # (1, TN) int32 class ids
    msk = msk_ref[...].astype(jnp.float32)          # (1, TN) float mask

    c_pad = pred.shape[0]
    # Logical (unclamped) global row index of every lane in this block. Tiles
    # whose DMA was clamped to the last block, or the garbage tail of the last
    # partial block, all land on col >= n_rows and are masked out below.
    col0 = (p * pl.num_programs(1) + i) * tn
    col = col0 + jax.lax.broadcasted_iota(jnp.int32, (1, tn), 1)
    valid = col < n_rows                            # (1, TN) bool

    cls = jax.lax.broadcasted_iota(jnp.int32, (c_pad, tn), 0)
    cond = (cls == tgt) & valid                     # true-select: garbage/-inf in
    msk_v = jnp.where(valid, msk, 0.0)              # non-target rows is discarded

    # Gather-select the target log-prob, scale by mask, accumulate per lane.
    acc_num[...] += jnp.where(cond, pred, 0.0) * msk_v
    acc_den[...] += msk_v

    @pl.when(i == pl.num_programs(1) - 1)
    def _finalize():
        num_ref[...] = jnp.sum(acc_num[...]).reshape(1, 1, 1)
        den_ref[...] = jnp.sum(acc_den[...]).reshape(1, 1, 1)


def masked_nll_loss(pred, target, mask, tile_lanes=None):
    """pred: (N, C) log-probs (f32 or bf16), target: (N,) ints, mask: (B, S); N=B*S."""
    # TODO(synk): weighted branch (self.weight is not None) not implemented;
    # module default is weight=None.
    n, c = pred.shape

    if pred.dtype == jnp.bfloat16:
        pred_k = pred                       # keep bf16 in HBM; cast per tile in-kernel
        sub = 16
    else:
        pred_k = pred.astype(jnp.float32)
        sub = 8
    c_pad = ((c + sub - 1) // sub) * sub

    # Class-major, lane-dense layout (classes on sublanes, rows on lanes).
    pred_cm = pred_k.T                                       # (C, N)
    if c_pad != c:
        pred_cm = jnp.pad(pred_cm, ((0, c_pad - c), (0, 0)))  # tiny class-axis pad only
    tgt_row = target.reshape(1, n).astype(jnp.int32)
    msk_row = mask.reshape(1, n).astype(jnp.float32)

    itemsize = jnp.dtype(pred_k.dtype).itemsize
    if tile_lanes is None:
        # VMEM bytes per lane: 2x-buffered pred/target/mask blocks + accumulators.
        # (1, TN) blocks pad to 8 sublanes in VMEM => 32 bytes/lane each.
        per_lane = 2 * (c_pad * itemsize + 32 + 32) + (c_pad * 4 + 32)
        tn = max(128, (_VMEM_TILE_BUDGET // per_lane) // 128 * 128)
    else:
        tn = max(128, (tile_lanes // 128) * 128)
    tn = min(tn, max(128, pl.cdiv(n, 128) * 128))            # never larger than needed

    tiles = pl.cdiv(n, tn)
    bpc = pl.cdiv(tiles, _NUM_CORES)                         # row tiles per core
    grid = (_NUM_CORES, bpc)

    def _col(p, i):
        # Clamp so no DMA is ever issued past the end of the arrays; the
        # duplicated tiles this produces are zeroed in-kernel via `valid`.
        return jnp.minimum(p * bpc + i, tiles - 1)

    num_parts, den_parts = pl.pallas_call(
        functools.partial(masked_nll_kernel, n_rows=n),
        out_shape=(jax.ShapeDtypeStruct((_NUM_CORES, 1, 1), jnp.float32),
                   jax.ShapeDtypeStruct((_NUM_CORES, 1, 1), jnp.float32)),
        grid=grid,
        in_specs=[
            pl.BlockSpec((c_pad, tn), lambda p, i: (0, _col(p, i))),
            pl.BlockSpec((1, tn), lambda p, i: (0, _col(p, i))),
            pl.BlockSpec((1, tn), lambda p, i: (0, _col(p, i))),
        ],
        out_specs=(
            pl.BlockSpec((1, 1, 1), lambda p, i: (p, 0, 0)),
            pl.BlockSpec((1, 1, 1), lambda p, i: (p, 0, 0)),
        ),
        scratch_shapes=[
            pltpu.VMEM((c_pad, tn), jnp.float32),   # per-lane numerator accumulator
            pltpu.VMEM((1, tn), jnp.float32),       # per-lane mask-sum accumulator
        ],
        compiler_params=pltpu.CompilerParams(
            dimension_semantics=("parallel", "arbitrary"),
            vmem_limit_bytes=32 * 1024 * 1024,
        ),
    )(pred_cm, tgt_row, msk_row)

    # NOTE: matches PyTorch behavior for sum(mask)==0 (inf/nan); no guard.
    return -(jnp.sum(num_parts) / jnp.sum(den_parts))


def masked_nll_loss_ref(pred, target, mask):
    pred = pred.astype(jnp.float32)
    mask_ = mask.reshape(-1, 1).astype(jnp.float32)
    picked = jnp.take_along_axis(pred * mask_, target.reshape(-1, 1), axis=1)
    return -jnp.sum(picked) / jnp.sum(mask)


def _make_inputs(key, batch, seq_len, n_classes, dtype=jnp.float32):
    n = batch * seq_len
    k1, k2, k3 = jax.random.split(key, 3)
    logits = jax.random.normal(k1, (n, n_classes), dtype=jnp.float32)
    pred = jax.nn.log_softmax(logits, axis=-1).astype(dtype)      # log-probs
    target = jax.random.randint(k2, (n,), 0, n_classes, dtype=jnp.int32)
    mask = (jax.random.uniform(k3, (batch, seq_len)) > 0.3).astype(jnp.float32)
    mask = mask.at[0, 0].set(1.0)   # ensure denominator > 0
    return pred, target, mask


if __name__ == "__main__":
    key = jax.random.PRNGKey(0)
    k_a, k_b, k_c = jax.random.split(key, 3)

    # Test 1: bc-LSTM-like small shape (C=6 emotion classes), single tile.
    pred, target, mask = _make_inputs(k_a, batch=2, seq_len=8, n_classes=6)
    loss = masked_nll_loss(pred, target, mask)
    jax.block_until_ready(loss)
    ref = masked_nll_loss_ref(pred, target, mask)
    assert jnp.allclose(loss, ref, rtol=1e-5, atol=1e-5), (loss, ref)

    # Test 2: multi-tile path (N=632 rows, 128-lane tiles -> 5 tiles split over
    # the 2-way "core" axis, with a partial last tile and a clamped dup tile).
    pred2, target2, mask2 = _make_inputs(k_b, batch=8, seq_len=79, n_classes=6)
    loss2 = masked_nll_loss(pred2, target2, mask2, tile_lanes=128)
    jax.block_until_ready(loss2)
    ref2 = masked_nll_loss_ref(pred2, target2, mask2)
    assert jnp.allclose(loss2, ref2, rtol=1e-5, atol=1e-5), (loss2, ref2)

    # Test 3: bf16 pred stays bf16 in HBM, cast per tile, accumulated in f32.
    pred3, target3, mask3 = _make_inputs(k_c, batch=4, seq_len=30, n_classes=8,
                                         dtype=jnp.bfloat16)
    loss3 = masked_nll_loss(pred3, target3, mask3)
    jax.block_until_ready(loss3)
    ref3 = masked_nll_loss_ref(pred3, target3, mask3)
    assert jnp.allclose(loss3, ref3, rtol=1e-4, atol=1e-4), (loss3, ref3)

    print("KERNEL_OK")
</pallas_src>

<mosaic_0001>
module attributes {stable_mosaic.version = 11 : i64} {
  func.func @masked_nll_kernel(%arg0: i32, %arg1: i32, %arg2: memref<8x128xf32, #tpu.memory_space<vmem>>, %arg3: memref<1x128xi32, #tpu.memory_space<vmem>>, %arg4: memref<1x128xf32, #tpu.memory_space<vmem>>, %arg5: memref<1x1x1xf32, #tpu.memory_space<vmem>>, %arg6: memref<1x1x1xf32, #tpu.memory_space<vmem>>, %arg7: memref<8x128xf32, #tpu.memory_space<vmem>>, %arg8: memref<1x128xf32, #tpu.memory_space<vmem>>) attributes {dimension_semantics = [#tpu.dimension_semantics<parallel>, #tpu.dimension_semantics<arbitrary>], iteration_bounds = array<i64: 2, 1>, scalar_prefetch = 0 : i64, scratch_operands = 2 : i64, tpu.core_type = #tpu.core_type<tc>, window_params = [{transform_indices = @transform_0, window_bounds = array<i64: 8, 128>}, {transform_indices = @transform_1, window_bounds = array<i64: 1, 128>}, {transform_indices = @transform_2, window_bounds = array<i64: 1, 128>}, {transform_indices = @transform_3, window_bounds = array<i64: 1, 1, 1>}, {transform_indices = @transform_4, window_bounds = array<i64: 1, 1, 1>}]} {
    %c0_i32 = arith.constant 0 : i32
    %0 = arith.cmpi eq, %arg1, %c0_i32 : i32
    %1 = arith.extui %0 : i1 to i32
    %c0_i32_0 = arith.constant 0 : i32
    %2 = arith.cmpi ne, %1, %c0_i32_0 : i32
    scf.if %2 {
      %cst_17 = arith.constant 0.000000e+00 : f32
      %34 = vector.broadcast %cst_17 : f32 to vector<8x128xf32>
      %c0_18 = arith.constant 0 : index
      %c0_19 = arith.constant 0 : index
      %35 = vector.load %arg7[%c0_18, %c0_19] : memref<8x128xf32, #tpu.memory_space<vmem>>, vector<8x128xf32>
      tpu.vector_store %arg7[%c0_18, %c0_19], %34 {strides = array<i32>} : memref<8x128xf32, #tpu.memory_space<vmem>>, vector<8x128xf32>,
      %cst_20 = arith.constant 0.000000e+00 : f32
      %36 = vector.broadcast %cst_20 : f32 to vector<1x128xf32>
      %c0_21 = arith.constant 0 : index
      %c0_22 = arith.constant 0 : index
      %37 = vector.load %arg8[%c0_21, %c0_22] : memref<1x128xf32, #tpu.memory_space<vmem>>, vector<1x128xf32>
      tpu.vector_store %arg8[%c0_21, %c0_22], %36 {strides = array<i32>} : memref<1x128xf32, #tpu.memory_space<vmem>>, vector<1x128xf32>,
    } else {
    }
    %c0 = arith.constant 0 : index
    %c0_1 = arith.constant 0 : index
    %3 = vector.load %arg2[%c0, %c0_1] : memref<8x128xf32, #tpu.memory_space<vmem>>, vector<8x128xf32>
    %c0_2 = arith.constant 0 : index
    %c0_3 = arith.constant 0 : index
    %4 = vector.load %arg3[%c0_2, %c0_3] : memref<1x128xi32, #tpu.memory_space<vmem>>, vector<1x128xi32>
    %c0_4 = arith.constant 0 : index
    %c0_5 = arith.constant 0 : index
    %5 = vector.load %arg4[%c0_4, %c0_5] : memref<1x128xf32, #tpu.memory_space<vmem>>, vector<1x128xf32>
    %c1_i32 = arith.constant 1 : i32
    %6 = arith.muli %arg0, %c1_i32 : i32
    %7 = arith.addi %6, %arg1 : i32
    %c128_i32 = arith.constant 128 : i32
    %8 = arith.muli %7, %c128_i32 : i32
    %9 = tpu.iota {dimensions = array<i32: 1>} : vector<1x128xi32>
    %10 = vector.broadcast %8 : i32 to vector<1x128xi32>
    %11 = arith.addi %10, %9 : vector<1x128xi32>
    %c16_i32 = arith.constant 16 : i32
    %12 = vector.broadcast %c16_i32 : i32 to vector<1x128xi32>
    %13 = arith.cmpi slt, %11, %12 : vector<1x128xi32>
    %14 = tpu.iota {dimensions = array<i32: 0>} : vector<8x128xi32>
    %15 = vector.broadcast %4 : vector<1x128xi32> to vector<8x128xi32>
    %16 = arith.cmpi eq, %14, %15 : vector<8x128xi32>
    %17 = vector.broadcast %13 : vector<1x128xi1> to vector<8x128xi1>
    %18 = arith.andi %16, %17 : vector<8x128xi1>
    %cst = arith.constant 0.000000e+00 : f32
    %19 = vector.broadcast %cst : f32 to vector<1x128xf32>
    %20 = arith.select %13, %5, %19 : vector<1x128xi1>, vector<1x128xf32>
    %c0_6 = arith.constant 0 : index
    %c0_7 = arith.constant 0 : index
    %21 = vector.load %arg7[%c0_6, %c0_7] : memref<8x128xf32, #tpu.memory_space<vmem>>, vector<8x128xf32>
    %cst_8 = arith.constant 0.000000e+00 : f32
    %22 = vector.broadcast %cst_8 : f32 to vector<8x128xf32>
    %23 = arith.select %18, %3, %22 : vector<8x128xi1>, vector<8x128xf32>
    %24 = vector.broadcast %20 : vector<1x128xf32> to vector<8x128xf32>
    %25 = arith.mulf %23, %24 : vector<8x128xf32>
    %26 = arith.addf %21, %25 : vector<8x128xf32>
    %c0_9 = arith.constant 0 : index
    %c0_10 = arith.constant 0 : index
    %27 = vector.load %arg7[%c0_9, %c0_10] : memref<8x128xf32, #tpu.memory_space<vmem>>, vector<8x128xf32>
    tpu.vector_store %arg7[%c0_9, %c0_10], %26 {strides = array<i32>} : memref<8x128xf32, #tpu.memory_space<vmem>>, vector<8x128xf32>,
    %c0_11 = arith.constant 0 : index
    %c0_12 = arith.constant 0 : index
    %28 = vector.load %arg8[%c0_11, %c0_12] : memref<1x128xf32, #tpu.memory_space<vmem>>, vector<1x128xf32>
    %29 = arith.addf %28, %20 : vector<1x128xf32>
    %c0_13 = arith.constant 0 : index
    %c0_14 = arith.constant 0 : index
    %30 = vector.load %arg8[%c0_13, %c0_14] : memref<1x128xf32, #tpu.memory_space<vmem>>, vector<1x128xf32>
    tpu.vector_store %arg8[%c0_13, %c0_14], %29 {strides = array<i32>} : memref<1x128xf32, #tpu.memory_space<vmem>>, vector<1x128xf32>,
    %c0_i32_15 = arith.constant 0 : i32
    %31 = arith.cmpi eq, %arg1, %c0_i32_15 : i32
    %32 = arith.extui %31 : i1 to i32
    %c0_i32_16 = arith.constant 0 : i32
    %33 = arith.cmpi ne, %32, %c0_i32_16 : i32
    scf.if %33 {
      %c0_17 = arith.constant 0 : index
      %c0_18 = arith.constant 0 : index
      %34 = vector.load %arg7[%c0_17, %c0_18] : memref<8x128xf32, #tpu.memory_space<vmem>>, vector<8x128xf32>
      %35 = vector.shape_cast %34 : vector<8x128xf32> to vector<1x8x128xf32>
      %cst_19 = arith.constant dense<0.000000e+00> : vector<1xf32>
      %36 = vector.multi_reduction <add>, %35, %cst_19 [1, 2] : vector<1x8x128xf32> to vector<1xf32>
      %37 = vector.shape_cast %36 : vector<1xf32> to vector<1x1x1xf32>
      %38 = vector.extract %37[0, 0, 0] : f32 from vector<1x1x1xf32>
      %39 = vector.broadcast %38 : f32 to vector<1x1x1xf32>
      %c0_20 = arith.constant 0 : index
      %c0_21 = arith.constant 0 : index
      %c0_22 = arith.constant 0 : index
      %40 = vector.load %arg5[%c0_20, %c0_21, %c0_22] : memref<1x1x1xf32, #tpu.memory_space<vmem>>, vector<1x1x1xf32>
      tpu.vector_store %arg5[%c0_20, %c0_21, %c0_22], %39 {strides = array<i32>} : memref<1x1x1xf32, #tpu.memory_space<vmem>>, vector<1x1x1xf32>,
      %c0_23 = arith.constant 0 : index
      %c0_24 = arith.constant 0 : index
      %41 = vector.load %arg8[%c0_23, %c0_24] : memref<1x128xf32, #tpu.memory_space<vmem>>, vector<1x128xf32>
      %42 = vector.shape_cast %41 : vector<1x128xf32> to vector<1x1x128xf32>
      %cst_25 = arith.constant dense<0.000000e+00> : vector<1xf32>
      %43 = vector.multi_reduction <add>, %42, %cst_25 [1, 2] : vector<1x1x128xf32> to vector<1xf32>
      %44 = vector.shape_cast %43 : vector<1xf32> to vector<1x1x1xf32>
      %45 = vector.extract %44[0, 0, 0] : f32 from vector<1x1x1xf32>
      %46 = vector.broadcast %45 : f32 to vector<1x1x1xf32>
      %c0_26 = arith.constant 0 : index
      %c0_27 = arith.constant 0 : index
      %c0_28 = arith.constant 0 : index
      %47 = vector.load %arg6[%c0_26, %c0_27, %c0_28] : memref<1x1x1xf32, #tpu.memory_space<vmem>>, vector<1x1x1xf32>
      tpu.vector_store %arg6[%c0_26, %c0_27, %c0_28], %46 {strides = array<i32>} : memref<1x1x1xf32, #tpu.memory_space<vmem>>, vector<1x1x1xf32>,
    } else {
    }
    return
  }
  func.func @transform_0(%arg0: i32, %arg1: i32) -> (i32, i32) {
    %c1_i32 = arith.constant 1 : i32
    %0 = arith.muli %arg0, %c1_i32 : i32
    %1 = arith.addi %0, %arg1 : i32
    %c0_i32 = arith.constant 0 : i32
    %2 = arith.minsi %1, %c0_i32 : i32
    %c0_i32_0 = arith.constant 0 : i32
    %c0_i32_1 = arith.constant 0 : i32
    return %c0_i32_0, %2 : i32, i32
  }
  func.func @transform_1(%arg0: i32, %arg1: i32) -> (i32, i32) {
    %c1_i32 = arith.constant 1 : i32
    %0 = arith.muli %arg0, %c1_i32 : i32
    %1 = arith.addi %0, %arg1 : i32
    %c0_i32 = arith.constant 0 : i32
    %2 = arith.minsi %1, %c0_i32 : i32
    %c0_i32_0 = arith.constant 0 : i32
    %c0_i32_1 = arith.constant 0 : i32
    return %c0_i32_0, %2 : i32, i32
  }
  func.func @transform_2(%arg0: i32, %arg1: i32) -> (i32, i32) {
    %c1_i32 = arith.constant 1 : i32
    %0 = arith.muli %arg0, %c1_i32 : i32
    %1 = arith.addi %0, %arg1 : i32
    %c0_i32 = arith.constant 0 : i32
    %2 = arith.minsi %1, %c0_i32 : i32
    %c0_i32_0 = arith.constant 0 : i32
    %c0_i32_1 = arith.constant 0 : i32
    return %c0_i32_0, %2 : i32, i32
  }
  func.func @transform_3(%arg0: i32, %arg1: i32) -> (i32, i32, i32) {
    %c0_i32 = arith.constant 0 : i32
    %c0_i32_0 = arith.constant 0 : i32
    %c0_i32_1 = arith.constant 0 : i32
    return %arg0, %c0_i32, %c0_i32_0 : i32, i32, i32
  }
  func.func @transform_4(%arg0: i32, %arg1: i32) -> (i32, i32, i32) {
    %c0_i32 = arith.constant 0 : i32
    %c0_i32_0 = arith.constant 0 : i32
    %c0_i32_1 = arith.constant 0 : i32
    return %arg0, %c0_i32, %c0_i32_0 : i32, i32, i32
  }
}

</mosaic_0001>

<llo_original>
// kernel: tpu_custom_call.1
$region0: #{tpu_custom_call.1}
  #allocation0 [shape = 'u32[]', space=smem, size = 0x4, offset = 0x4, fixed_abs, tag = 'smem constant byte address 0x4 - core index']
  #allocation1 [shape = 'u32[144,128]{1,0:T(1,128)}', space=vmem, size = 0x12000, scoped, tag = 'internal scratch']
  #allocation2 [shape = 'f32[8,128]{1,0:T(8,128)}', space=vmem, size = 0x1000, scoped, tag = 'scratch operand']
  #allocation3 [shape = 'f32[1,128]{1,0:T(1,128)}', space=vmem, size = 0x200, scoped, tag = 'scratch operand']
  %s0 = inlined_call_operand.hbm [shape: f32[8,16], index: 0, kind: input, shape index: {}]
  %s1 = inlined_call_operand.vmem [shape: s32[1,16], index: 1, kind: input, shape index: {}]
  %s2 = inlined_call_operand.vmem [shape: f32[1,16], index: 2, kind: input, shape index: {}]
  %s3 = inlined_call_operand.vmem [shape: f32[2,1,1], index: 3, kind: output, shape index: {0}]
  %s4 = inlined_call_operand.vmem [shape: f32[2,1,1], index: 4, kind: output, shape index: {1}]
  %5 = xla_tuple %s3, %s4
  %s6 = sld [smem:[#allocation0]]
  $region65: #{tpu_custom_call.1} parent=0
    _
  %s8 = ssub.s32 1, %s6
  %s9 = scalar_select 0, %s8, %s6
  $region1: #{tpu_custom_call.1} parent=0
    #allocation4 [shape = 'u8[8192]{0}', space=vmem, size = 0x2000, scoped, tag = 'input window, operand 0']
    #allocation5 [shape = 's32[2]{0}', space=sflag, size = 0x8, scoped, tag = 'scoped memory for tpu_custom_call.1']
    %10 = vsyncpa [#allocation5], 0
    %s11 = scalar_lea.sflag [#allocation5], 1
    %12 = vsyncpa %s11, 0
    loop: start=0, step=1, limit=4
    $region2: #{tpu_custom_call.1} parent=1 // loop_pre_header
      _
    $region3: #{tpu_custom_call.1} parent=1 // loop_header
      %s14 = sphi 0, %s18
      %p15 = scmp.ge.s32.totalorder %s14, 4
      %s21 = sphi 0, %s33
      %s22 = sphi 0, %s29
      %s23 = sphi 0, %s21
      %s24 = sphi 0, %s22
      %s25 = sphi 0, %s23
      %s26 = sphi 0, %s24
      %s42 = sphi 0, %s44
      %s45 = sphi 0, %s42
      %s46 = sphi 0, %s45
      %s62 = sphi 0, %s46
      %s74 = sphi 0, %s76
      %s77 = sphi 0, %s74
      %s78 = sphi 0, %s77
      %s94 = sphi 0, %s78
      %s106 = sphi 0, %s108
      %s109 = sphi 0, %s106
      %s110 = sphi 0, %s109
      %s126 = sphi 0, %s110
      %s132 = sphi 0, %s134
      %s135 = sphi 0, %s132
      %s136 = sphi 0, %s135
      %s152 = sphi 0, %s136
      %s158 = sphi 0, %s160
      %s161 = sphi 0, %s158
      %s162 = sphi 0, %s161
      %s178 = sphi 0, %s162
    $region4: #{tpu_custom_call.1} parent=1 // loop_header_branch
      %17 = sbr.rel (%p15) target = $region8
    $region5: #{tpu_custom_call.1} parent=1 // loop_body
      %s19 = ssub.s32 %s14, 1
      %s20 = ssub.s32 %s14, 2
      %s27 = sadd.s32 1, %s22
      %p28 = scmp.ge.s32.totalorder %s27, 1
      %s29 = scalar_select %p28, 0, %s27
      %s30 = sadd.s32 1, %s21
      %s31 = scalar_select %p28, %s30, %s21
      %p32 = scmp.ge.s32.totalorder %s31, 2
      %s33 = scalar_select %p32, 0, %s31
      %s34 = sadd.s32 %s21, %s22
      %p35 = scmp.lt.s32.totalorder %s34, 0
      %s36 = scalar_select %p35, %s34, 0
      %s37 = sadd.s32 %s33, %s29
      %p38 = scmp.lt.s32.totalorder %s37, 0
      %s39 = scalar_select %p38, %s37, 0
      %s40 = ssub.s32 %s36, %s39
      %p41 = scmp.eq.s32.totalorder %s40, 0
      %s43 = sadd.s32 %s42, 1
      %s44 = scalar_select %p41, %s42, %s43
      %p47 = pneg %p41
      %p48 = scmp.eq.s32.totalorder %s14, 1
      %p49 = por %p47, %p48
      %p50 = scmp.ne.s32.totalorder %s42, %s45
      %p51 = scmp.eq.s32.totalorder %s14, 0
      %p52 = por %p50, %p51
      %p53 = scmp.ne.s32.totalorder %s42, %s45
      %p54 = scmp.eq.s32.totalorder %s19, 1
      %p55 = por %p53, %p54
      %p56 = scmp.ne.s32.totalorder %s45, %s46
      %p57 = scmp.eq.s32.totalorder %s19, 0
      %p58 = por %p56, %p57
      %p59 = scmp.ne.s32.totalorder %s45, %s46
      %p60 = scmp.eq.s32.totalorder %s20, 1
      %p61 = por %p59, %p60
      %p63 = scmp.ne.s32.totalorder %s46, %s62
      %p64 = scmp.eq.s32.totalorder %s20, 0
      %p65 = por %p63, %p64
      %s66 = sadd.s32 %s21, %s22
      %p67 = scmp.lt.s32.totalorder %s66, 0
      %s68 = scalar_select %p67, %s66, 0
      %s69 = sadd.s32 %s33, %s29
      %p70 = scmp.lt.s32.totalorder %s69, 0
      %s71 = scalar_select %p70, %s69, 0
      %s72 = ssub.s32 %s68, %s71
      %p73 = scmp.eq.s32.totalorder %s72, 0
      %s75 = sadd.s32 %s74, 1
      %s76 = scalar_select %p73, %s74, %s75
      %p79 = pneg %p73
      %p80 = scmp.eq.s32.totalorder %s14, 1
      %p81 = por %p79, %p80
      %p82 = scmp.ne.s32.totalorder %s74, %s77
      %p83 = scmp.eq.s32.totalorder %s14, 0
      %p84 = por %p82, %p83
      %p85 = scmp.ne.s32.totalorder %s74, %s77
      %p86 = scmp.eq.s32.totalorder %s19, 1
      %p87 = por %p85, %p86
      %p88 = scmp.ne.s32.totalorder %s77, %s78
      %p89 = scmp.eq.s32.totalorder %s19, 0
      %p90 = por %p88, %p89
      %p91 = scmp.ne.s32.totalorder %s77, %s78
      %p92 = scmp.eq.s32.totalorder %s20, 1
      %p93 = por %p91, %p92
      %p95 = scmp.ne.s32.totalorder %s78, %s94
      %p96 = scmp.eq.s32.totalorder %s20, 0
      %p97 = por %p95, %p96
      %s98 = sadd.s32 %s21, %s22
      %p99 = scmp.lt.s32.totalorder %s98, 0
      %s100 = scalar_select %p99, %s98, 0
      %s101 = sadd.s32 %s33, %s29
      %p102 = scmp.lt.s32.totalorder %s101, 0
      %s103 = scalar_select %p102, %s101, 0
      %s104 = ssub.s32 %s100, %s103
      %p105 = scmp.eq.s32.totalorder %s104, 0
      %s107 = sadd.s32 %s106, 1
      %s108 = scalar_select %p105, %s106, %s107
      %p111 = pneg %p105
      %p112 = scmp.eq.s32.totalorder %s14, 1
      %p113 = por %p111, %p112
      %p114 = scmp.ne.s32.totalorder %s106, %s109
      %p115 = scmp.eq.s32.totalorder %s14, 0
      %p116 = por %p114, %p115
      %p117 = scmp.ne.s32.totalorder %s106, %s109
      %p118 = scmp.eq.s32.totalorder %s19, 1
      %p119 = por %p117, %p118
      %p120 = scmp.ne.s32.totalorder %s109, %s110
      %p121 = scmp.eq.s32.totalorder %s19, 0
      %p122 = por %p120, %p121
      %p123 = scmp.ne.s32.totalorder %s109, %s110
      %p124 = scmp.eq.s32.totalorder %s20, 1
      %p125 = por %p123, %p124
      %p127 = scmp.ne.s32.totalorder %s110, %s126
      %p128 = scmp.eq.s32.totalorder %s20, 0
      %p129 = por %p127, %p128
      %s130 = ssub.s32 %s21, %s33
      %p131 = scmp.eq.s32.totalorder %s130, 0
      %s133 = sadd.s32 %s132, 1
      %s134 = scalar_select %p131, %s132, %s133
      %p137 = pneg %p131
      %p138 = scmp.eq.s32.totalorder %s14, 1
      %p139 = por %p137, %p138
      %p140 = scmp.ne.s32.totalorder %s132, %s135
      %p141 = scmp.eq.s32.totalorder %s14, 0
      %p142 = por %p140, %p141
      %p143 = scmp.ne.s32.totalorder %s132, %s135
      %p144 = scmp.eq.s32.totalorder %s19, 1
      %p145 = por %p143, %p144
      %p146 = scmp.ne.s32.totalorder %s135, %s136
      %p147 = scmp.eq.s32.totalorder %s19, 0
      %p148 = por %p146, %p147
      %p149 = scmp.ne.s32.totalorder %s135, %s136
      %p150 = scmp.eq.s32.totalorder %s20, 1
      %p151 = por %p149, %p150
      %p153 = scmp.ne.s32.totalorder %s136, %s152
      %p154 = scmp.eq.s32.totalorder %s20, 0
      %p155 = por %p153, %p154
      %s156 = ssub.s32 %s21, %s33
      %p157 = scmp.eq.s32.totalorder %s156, 0
      %s159 = sadd.s32 %s158, 1
      %s160 = scalar_select %p157, %s158, %s159
      %p163 = pneg %p157
      %p164 = scmp.eq.s32.totalorder %s14, 1
      %p165 = por %p163, %p164
      %p166 = scmp.ne.s32.totalorder %s158, %s161
      %p167 = scmp.eq.s32.totalorder %s14, 0
      %p168 = por %p166, %p167
      %p169 = scmp.ne.s32.totalorder %s158, %s161
      %p170 = scmp.eq.s32.totalorder %s19, 1
      %p171 = por %p169, %p170
      %p172 = scmp.ne.s32.totalorder %s161, %s162
      %p173 = scmp.eq.s32.totalorder %s19, 0
      %p174 = por %p172, %p173
      %p175 = scmp.ne.s32.totalorder %s161, %s162
      %p176 = scmp.eq.s32.totalorder %s20, 1
      %p177 = por %p175, %p176
      %p179 = scmp.ne.s32.totalorder %s162, %s178
      %p180 = scmp.eq.s32.totalorder %s20, 0
      %p181 = por %p179, %p180
      %p182 = scmp.le.s32.totalorder 1, %s14
      %p183 = scmp.lt.s32.totalorder %s14, 3
      %p184 = pnand %p182, %p183
      %p185 = pneg %p184
      // Predicated region
      $region9: #{tpu_custom_call.1} parent=5 // pred_check
        _
      $region10: #{tpu_custom_call.1} parent=5 // pred_check_branch
        %187 = sbr.rel (%p184) target = $region12
      $region11: #{tpu_custom_call.1} parent=5 // pred_region
        %s188 = ssub.s32 %s14, 1
      $region12: #{tpu_custom_call.1} parent=5 // pred_fallthru
        _
      %p189 = scmp.lt.s32.totalorder %s14, 2
      // Predicated region
      $region13: #{tpu_custom_call.1} parent=5 // pred_check
        %p190 = pneg %p189
      $region14: #{tpu_custom_call.1} parent=5 // pred_check_branch
        %192 = sbr.rel (%p190) target = $region16
      $region15: #{tpu_custom_call.1} parent=5 // pred_region
        // Predicated region
        $region17: #{tpu_custom_call.1} parent=15 // pred_check
          %p193 = pneg %p52
        $region18: #{tpu_custom_call.1} parent=15 // pred_check_branch
          %195 = sbr.rel (%p193) target = $region20
        $region19: #{tpu_custom_call.1} parent=15 // pred_region
          %s196 = sand.u32 %s42, 1
          %s197 = scalar_lea.sflag [#allocation5], %s196
          %s198 = sand.u32 %s42, 1
          %s199 = smul.addr %s198, 8
          %s200 = scalar_lea.vmem [#allocation4], %s199
          %s201 = sadd.s32 %s21, %s22
          %p202 = scmp.lt.s32.totalorder %s201, 0
          %s203 = scalar_select %p202, %s201, 0
          %s205 = ssub.s32 128, 128
          %206 = vsyncadd %s197, %s205
          %s207 = smul.addr %s203, 128
          %s208 = scalar_lea.hbm %s0, %s207
          %s210 = sshll.u32 %s200, 4
          %s211 = int_to_ptr.vmem [resolvable:$true] %s210
          %213 = dma.hbm_to_vmem [thread:$0]  %s208, 128, %s211, %s197
        $region20: #{tpu_custom_call.1} parent=15 // pred_fallthru
          _
        // Predicated region
        $region21: #{tpu_custom_call.1} parent=15 // pred_check
          %p214 = pneg %p84
        $region22: #{tpu_custom_call.1} parent=15 // pred_check_branch
          %216 = sbr.rel (%p214) target = $region24
        $region23: #{tpu_custom_call.1} parent=15 // pred_region
          %s217 = sadd.s32 %s21, %s22
          %p218 = scmp.lt.s32.totalorder %s217, 0
          %s219 = scalar_select %p218, %s217, 0
          %p220 = scmp.lt.s32.totalorder %s219, 0
          %s221 = scalar_select %p220, %s219, 0
          %s222 = scalar_lea.vmem %s1, %s221
          %s223 = sadd.s32 %s21, %s22
          %p224 = scmp.lt.s32.totalorder %s223, 0
          %s225 = scalar_select %p224, %s223, 0
        $region24: #{tpu_custom_call.1} parent=15 // pred_fallthru
          _
        // Predicated region
        $region25: #{tpu_custom_call.1} parent=15 // pred_check
          %p226 = pneg %p116
        $region26: #{tpu_custom_call.1} parent=15 // pred_check_branch
          %228 = sbr.rel (%p226) target = $region28
        $region27: #{tpu_custom_call.1} parent=15 // pred_region
          %s229 = sadd.s32 %s21, %s22
          %p230 = scmp.lt.s32.totalorder %s229, 0
          %s231 = scalar_select %p230, %s229, 0
          %p232 = scmp.lt.s32.totalorder %s231, 0
          %s233 = scalar_select %p232, %s231, 0
          %s234 = scalar_lea.vmem %s2, %s233
          %s235 = sadd.s32 %s21, %s22
          %p236 = scmp.lt.s32.totalorder %s235, 0
          %s237 = scalar_select %p236, %s235, 0
        $region28: #{tpu_custom_call.1} parent=15 // pred_fallthru
          _
      $region16: #{tpu_custom_call.1} parent=5 // pred_fallthru
        _
      %p238 = scmp.le.s32.totalorder 1, %s14
      %p239 = scmp.lt.s32.totalorder %s14, 3
      %p240 = pnand %p238, %p239
      %p241 = pneg %p240
      // Predicated region
      $region29: #{tpu_custom_call.1} parent=5 // pred_check
        _
      $region30: #{tpu_custom_call.1} parent=5 // pred_check_branch
        %243 = sbr.rel (%p240) target = $region32
      $region31: #{tpu_custom_call.1} parent=5 // pred_region
        %s244 = ssub.s32 %s14, 1
        %s245 = sand.u32 %s45, 1
        %s246 = scalar_lea.sflag [#allocation5], %s245
        %s247 = sand.u32 %s45, 1
        %s248 = smul.addr %s247, 8
        %s249 = scalar_lea.vmem [#allocation4], %s248
        // Predicated region
        $region33: #{tpu_custom_call.1} parent=31 // pred_check
          %p250 = pneg %p58
        $region34: #{tpu_custom_call.1} parent=31 // pred_check_branch
          %252 = sbr.rel (%p250) target = $region36
        $region35: #{tpu_custom_call.1} parent=31 // pred_region
          %253 = dma.done %s246, 128
        $region36: #{tpu_custom_call.1} parent=31 // pred_fallthru
          _
        %s254 = sand.u32 %s45, 1
        %s255 = scalar_lea.sflag [#allocation5], %s254
        %s256 = sand.u32 %s45, 1
        %s257 = smul.addr %s256, 8
        %s258 = scalar_lea.vmem [#allocation4], %s257
        %p259 = pneg %p58
        %p260 = pneg %p55
        %s261 = sadd.s32 %s23, %s24
        %p262 = scmp.lt.s32.totalorder %s261, 0
        %s263 = scalar_select %p262, %s261, 0
        %p264 = scmp.lt.s32.totalorder %s263, 0
        %s265 = scalar_select %p264, %s263, 0
        %s266 = scalar_lea.vmem %s1, %s265
        %p267 = pneg %p90
        %p268 = pneg %p87
        %s269 = sadd.s32 %s23, %s24
        %p270 = scmp.lt.s32.totalorder %s269, 0
        %s271 = scalar_select %p270, %s269, 0
        %p272 = scmp.lt.s32.totalorder %s271, 0
        %s273 = scalar_select %p272, %s271, 0
        %s274 = scalar_lea.vmem %s2, %s273
        %p275 = pneg %p122
        %p276 = pneg %p119
        %p277 = pneg %p148
        %p278 = pneg %p145
        %p279 = scmp.lt.s32.totalorder %s23, 1
        %s280 = scalar_select %p279, %s23, 1
        %s281 = scalar_lea.vmem %s3, %s280
        %p282 = pneg %p174
        %p283 = pneg %p171
        %p284 = scmp.lt.s32.totalorder %s23, 1
        %s285 = scalar_select %p284, %s23, 1
        %s286 = scalar_lea.vmem %s4, %s285
        %s287 = sadd.s32 %s23, %s24
        %p288 = scmp.lt.s32.totalorder %s287, 0
        %s289 = scalar_select %p288, %s287, 0
        %s290 = sadd.s32 %s23, %s24
        %p291 = scmp.lt.s32.totalorder %s290, 0
        %s292 = scalar_select %p291, %s290, 0
        %p293 = scmp.lt.s32.totalorder %s292, 0
        %s294 = scalar_select %p293, %s292, 0
        %s295 = scalar_lea.vmem %s1, %s294
        %s296 = sadd.s32 %s23, %s24
        %p297 = scmp.lt.s32.totalorder %s296, 0
        %s298 = scalar_select %p297, %s296, 0
        %s299 = sadd.s32 %s23, %s24
        %p300 = scmp.lt.s32.totalorder %s299, 0
        %s301 = scalar_select %p300, %s299, 0
        %p302 = scmp.lt.s32.totalorder %s301, 0
        %s303 = scalar_select %p302, %s301, 0
        %s304 = scalar_lea.vmem %s2, %s303
        %s305 = sadd.s32 %s23, %s24
        %p306 = scmp.lt.s32.totalorder %s305, 0
        %s307 = scalar_select %p306, %s305, 0
        %p308 = scmp.lt.s32.totalorder %s23, 1
        %s309 = scalar_select %p308, %s23, 1
        %s310 = scalar_lea.vmem %s3, %s309
        %p311 = scmp.lt.s32.totalorder %s23, 1
        %s312 = scalar_select %p311, %s23, 1
        %s313 = scalar_lea.vmem %s4, %s312
        %p314 = scmp.eq.s32.totalorder %s24, 0
        // Predicated region
        $region37: #{tpu_custom_call.1} parent=31 // pred_check
          %p315 = pneg %p314
        $region38: #{tpu_custom_call.1} parent=31 // pred_check_branch
          %317 = sbr.rel (%p315) target = $region40
        $region39: #{tpu_custom_call.1} parent=31 // pred_region
          %318 = vst [vmem:[#allocation2] sm:$0xff] 0.0
          %319 = vst [vmem:[#allocation3] sm:$0x1] 0.0
        $region40: #{tpu_custom_call.1} parent=31 // pred_fallthru
          _
        %v320 = vld [vmem:[%s249] sm:$0xff]
        %v321 = vld [vmem:[%s295] sm:$0x1]
        %v322 = vld [vmem:[%s304] sm:$0x1]
        %s323 = sadd.s32 %s23, %s24
        %s324 = smul.u32 %s323, 128
        %v325 = vlaneseq
        %v326 = vand.u32 %v325, 127
        %v327 = vstv %s324
        %v328 = vadd.s32 %v327, %v326
        %vm329 = vcmp.lt.s32.totalorder %v328, 16
        %v330 = vlaneseq
        %v331 = vshrl.u32 %v330, 7
        %v332 = vlaneseq
        %v333 = vshrl.u32 %v332, 7
        %v334 = vsub.s32 0, %v333
        %v335 = vrot.slane %v321, %v334
        %vm336 = vcmp.eq.s32.totalorder %v331, %v335
        %v337 = vsel %vm329, 1, 0
        %vm338 = vcmp.eq.s32.totalorder %v337, 1
        %vm339 = vmand %vm336, %vm338
        %v340 = vsel %vm329, %v322, 0.0
        %v341 = vld [vmem:[#allocation2] sm:$0xff]
        %v342 = vsel %vm339, %v320, 0.0
        %v343 = vlaneseq
        %v344 = vshrl.u32 %v343, 7
        %v345 = vsub.s32 0, %v344
        %v346 = vrot.slane %v340, %v345
        %v347 = vmul.f32 %v342, %v346
        %v348 = vadd.f32 %v341, %v347
        %349 = vst [vmem:[#allocation2] sm:$0xff] %v348
        %v350 = vld [vmem:[#allocation3] sm:$0x1]
        %v351 = vadd.f32 %v350, %v340
        %352 = vst [vmem:[#allocation3] sm:$0x1] %v351
        // Predicated region
        $region41: #{tpu_custom_call.1} parent=31 // pred_check
          %p353 = pneg %p314
        $region42: #{tpu_custom_call.1} parent=31 // pred_check_branch
          %355 = sbr.rel (%p353) target = $region44
        $region43: #{tpu_custom_call.1} parent=31 // pred_region
          %v356 = vld [vmem:[#allocation2] sm:$0xff]
          %357 = vadd.xlane.f32.xlu0 %v356
          %v358 = vpop.xlane.xlu0 %357
          %v359 = vrot.slane %v358, 4
          %v360 = vadd.f32 %v358, %v359
          %v361 = vrot.slane %v360, 2
          %v362 = vadd.f32 %v360, %v361
          %v363 = vrot.slane %v362, 1
          %v364 = vadd.f32 %v362, %v363
          %s365 = vtos %v364
          %v366 = vstv %s365
          %vm367 = vcmask 0
          %368 = vst.msk [vmem:[%s310] sm:$0x1] %vm367, %v366
          %v369 = vld [vmem:[#allocation3] sm:$0x1]
          %vm370 = vcmask 1040384
          %v371 = vsel %vm370, %v369, 0.0
          %372 = vadd.xlane.f32.xlu0 %v371
          %v373 = vpop.xlane.xlu0 %372
          %v374 = vrot.slane %v373, 4
          %v375 = vadd.f32 %v373, %v374
          %v376 = vrot.slane %v375, 2
          %v377 = vadd.f32 %v375, %v376
          %v378 = vrot.slane %v377, 1
          %v379 = vadd.f32 %v377, %v378
          %s380 = vtos %v379
          %v381 = vstv %s380
          %382 = vst.msk [vmem:[%s313] sm:$0x1] %vm367, %v381
        $region44: #{tpu_custom_call.1} parent=31 // pred_fallthru
          _
        %p383 = scmp.lt.s32.totalorder %s23, 1
        %s384 = scalar_select %p383, %s23, 1
        %s385 = scalar_lea.vmem %s3, %s384
        %p386 = scmp.lt.s32.totalorder %s23, 1
        %s387 = scalar_select %p386, %s23, 1
        %s388 = scalar_lea.vmem %s4, %s387
        // Predicated region
        $region45: #{tpu_custom_call.1} parent=31 // pred_check
          %p389 = pneg %p145
        $region46: #{tpu_custom_call.1} parent=31 // pred_check_branch
          %391 = sbr.rel (%p389) target = $region48
        $region47: #{tpu_custom_call.1} parent=31 // pred_region
          _
        $region48: #{tpu_custom_call.1} parent=31 // pred_fallthru
          _
        // Predicated region
        $region49: #{tpu_custom_call.1} parent=31 // pred_check
          %p392 = pneg %p171
        $region50: #{tpu_custom_call.1} parent=31 // pred_check_branch
          %394 = sbr.rel (%p392) target = $region52
        $region51: #{tpu_custom_call.1} parent=31 // pred_region
          _
        $region52: #{tpu_custom_call.1} parent=31 // pred_fallthru
          _
      $region32: #{tpu_custom_call.1} parent=5 // pred_fallthru
        _
      %p395 = scmp.le.s32.totalorder 2, %s14
      // Predicated region
      $region53: #{tpu_custom_call.1} parent=5 // pred_check
        %p396 = pneg %p395
      $region54: #{tpu_custom_call.1} parent=5 // pred_check_branch
        %398 = sbr.rel (%p396) target = $region56
      $region55: #{tpu_custom_call.1} parent=5 // pred_region
        %s399 = ssub.s32 %s14, 2
        // Predicated region
        $region57: #{tpu_custom_call.1} parent=55 // pred_check
          %p400 = pneg %p151
        $region58: #{tpu_custom_call.1} parent=55 // pred_check_branch
          %402 = sbr.rel (%p400) target = $region60
        $region59: #{tpu_custom_call.1} parent=55 // pred_region
          %p403 = scmp.lt.s32.totalorder %s25, 1
          %s404 = scalar_select %p403, %s25, 1
          %s405 = scalar_lea.vmem %s3, %s404
        $region60: #{tpu_custom_call.1} parent=55 // pred_fallthru
          _
        // Predicated region
        $region61: #{tpu_custom_call.1} parent=55 // pred_check
          %p406 = pneg %p177
        $region62: #{tpu_custom_call.1} parent=55 // pred_check_branch
          %408 = sbr.rel (%p406) target = $region64
        $region63: #{tpu_custom_call.1} parent=55 // pred_region
          %p409 = scmp.lt.s32.totalorder %s25, 1
          %s410 = scalar_select %p409, %s25, 1
          %s411 = scalar_lea.vmem %s4, %s410
        $region64: #{tpu_custom_call.1} parent=55 // pred_fallthru
          _
      $region56: #{tpu_custom_call.1} parent=5 // pred_fallthru
        _
    $region6: #{tpu_custom_call.1} parent=1 // loop_footer
      %s18 = sadd.s32 1, %s14
    $region7: #{tpu_custom_call.1} parent=1 // loop_footer_branch
      %13 = sbr.rel target = $region3
    $region8: #{tpu_custom_call.1} parent=1 // loop_exit
      _
    %412 = vsyncpa [#allocation5], 1
    %s413 = scalar_lea.sflag [#allocation5], 1
    %414 = vsyncpa %s413, 1

</llo_original>
